<compile_context>
chip_gen: v7x
topology: tpu7x:2x2x1
jax: 0.10.0
libtpu: 0.0.40
codegen_flags: <defaults>
</compile_context>

<pallas_src>
import jax
import jax.numpy as jnp
from jax import lax
from jax.experimental import pallas as pl
from jax.experimental.pallas import tpu as pltpu


_SQRT_2_OVER_PI = 0.7978845608028654


def _gelu_tanh(x):
    # tanh-form GELU (max |err| vs exact erf GELU ~3e-4); tanh goes to the EUP
    # slot (otherwise idle here) instead of a long VALU polynomial.
    return 0.5 * x * (1.0 + jnp.tanh(_SQRT_2_OVER_PI * (x + 0.044715 * (x * x * x))))


# ----------------------------- Pallas kernel ---------------------------------

def make_conv_gelu_kernel(Cin, Cout, H, W):
    Wp = W + 2                 # padded row stride
    Mrow = H * Wp              # flattened output length (incl. 2 wrap cols / row)
    taps = [(dy, dx) for dy in range(3) for dx in range(3)]

    def kernel(x_ref, w_ref, b_ref, o_ref):
        # x_ref: (Cin, Fp)        bf16  flattened zero-padded image
        # w_ref: (9, Cout, Cin)   bf16  per-tap weight matrices (dy-major, dx-minor)
        # b_ref: (Cout, 1)        f32
        # o_ref: (Cout, Mrow)     f32   lane-dense conv+bias+GELU output
        x = x_ref[...]                                   # single VMEM load
        acc = jnp.zeros((Cout, Mrow), jnp.float32)
        for t, (dy, dx) in enumerate(taps):              # unrolled: 9 small MXU dots
            base = dy * Wp + dx                          # static flat tap offset
            acc = acc + jnp.dot(w_ref[t], x[:, base:base + Mrow],
                                preferred_element_type=jnp.float32)
        acc = acc + b_ref[...]                           # (Cout,1) broadcast over lanes
        o_ref[...] = _gelu_tanh(acc).astype(o_ref.dtype)

    return kernel


# ------------------------------ wrapper ---------------------------------------

def upsample_block_forward(x_nchw, w_oihw, bias):
    """Pallas implementation of upsample_block.forward.

    x_nchw : (N, Cin, H, W) float32
    w_oihw : (Cout, Cin, 3, 3) float32   (PyTorch Conv2d weight layout)
    bias   : (Cout,) float32
    returns: (N, Cout//4, 2H, 2W) float32  (PixelShuffle(2) of gelu(conv(x)))
    """
    N, Cin, H, W = x_nchw.shape
    Cout = w_oihw.shape[0]
    assert Cout % 4 == 0, "PixelShuffle(2) needs Cout divisible by 4"

    Wp = W + 2                  # padded width / flat row stride
    Hp = H + 3                  # 1 top pad + 1 bottom pad + 1 extra guard row
    Fp = Hp * Wp                # flattened padded image length
    Mrow = H * Wp               # flattened output length (with wrap columns)

    # --- prep glue (1x input traffic): zero-pad, flatten spatial, cast bf16 ---
    xpad = jnp.pad(x_nchw, ((0, 0), (0, 0), (1, 2), (1, 1)))      # (N,Cin,H+3,W+2)
    xflat = xpad.reshape(N, Cin, Fp).astype(jnp.bfloat16)

    # weights: (Cout,Cin,kh,kw) -> (kh,kw,Cout,Cin) -> (9, Cout, Cin); matches tap order
    w_taps = jnp.transpose(w_oihw, (2, 3, 0, 1)).reshape(9, Cout, Cin).astype(jnp.bfloat16)
    b_col = bias.astype(jnp.float32).reshape(Cout, 1)

    # --- Pallas kernel: fused im2col + conv-matmul + bias + GELU --------------
    # TODO(synk): for production DFCAN feature maps (H*W, Cin large), also tile
    # over row bands with a 1-row halo (manual make_async_copy) and re-budget
    # the tile for v7x's 64 MiB VMEM; at these shapes one image per step is the
    # biggest (and best) tile.
    kernel = make_conv_gelu_kernel(Cin, Cout, H, W)
    conv_gelu = pl.pallas_call(
        kernel,
        out_shape=jax.ShapeDtypeStruct((N, Cout, Mrow), jnp.float32),
        grid_spec=pltpu.PrefetchScalarGridSpec(
            num_scalar_prefetch=0,
            grid=(N,),
            in_specs=[
                pl.BlockSpec((None, Cin, Fp), lambda n: (n, 0, 0)),
                pl.BlockSpec((9, Cout, Cin), lambda n: (0, 0, 0)),
                pl.BlockSpec((Cout, 1), lambda n: (0, 0)),
            ],
            out_specs=pl.BlockSpec((None, Cout, Mrow), lambda n: (n, 0, 0)),
        ),
        compiler_params=pltpu.CompilerParams(
            dimension_semantics=("parallel",)),
    )
    y = conv_gelu(xflat, w_taps, b_col)                           # (N, Cout, H*(W+2))

    # --- post glue: drop wrap columns, PixelShuffle(2) (single transpose) -----
    y = y.reshape(N, Cout, H, Wp)[:, :, :, :W]                    # (N, Cout, H, W)
    r = 2
    C2 = Cout // (r * r)
    y = y.reshape(N, C2, r, r, H, W)
    y = jnp.transpose(y, (0, 1, 4, 2, 5, 3))                      # (N,C2,H,r,W,r)
    return y.reshape(N, C2, H * r, W * r)


# ------------------------------ reference -------------------------------------

def upsample_block_reference(x_nchw, w_oihw, bias):
    y = lax.conv_general_dilated(
        x_nchw, w_oihw, window_strides=(1, 1), padding="SAME",
        dimension_numbers=("NCHW", "OIHW", "NCHW"))
    y = y + bias[None, :, None, None]
    y = jax.nn.gelu(y, approximate=False)
    N, Cout, H, W = y.shape
    r = 2
    C2 = Cout // (r * r)
    y = y.reshape(N, C2, r, r, H, W)
    y = jnp.transpose(y, (0, 1, 4, 2, 5, 3))
    return y.reshape(N, C2, H * r, W * r)


# -------------------------------- main -----------------------------------------

if __name__ == "__main__":
    N, Cin, Cout, H, W = 2, 4, 8, 16, 16   # upsample_block(in_channels=4, out_channels=8)

    kw, kb, kx = jax.random.split(jax.random.PRNGKey(0), 3)
    w = jax.random.normal(kw, (Cout, Cin, 3, 3), jnp.float32) * 0.1
    b = jax.random.normal(kb, (Cout,), jnp.float32) * 0.1
    x = jax.random.normal(kx, (N, Cin, H, W), jnp.float32)

    out = jax.block_until_ready(upsample_block_forward(x, w, b))
    ref = jax.block_until_ready(upsample_block_reference(x, w, b))

    assert out.shape == (N, Cout // 4, 2 * H, 2 * W), out.shape
    max_err = float(jnp.max(jnp.abs(out - ref)))
    # bf16 conv operands (per perf review) + tanh-form GELU: expected max abs
    # deviation from the f32/erf reference at these magnitudes is ~3e-3.
    assert max_err < 2e-2, f"mismatch vs reference: max abs err {max_err}"

    print("KERNEL_OK")
</pallas_src>

<mosaic_0001>
module attributes {stable_mosaic.version = 11 : i64} {
  func.func @kernel(%arg0: i32, %arg1: memref<1x4x342xbf16, #tpu.memory_space<vmem>>, %arg2: memref<9x8x4xbf16, #tpu.memory_space<vmem>>, %arg3: memref<8x1xf32, #tpu.memory_space<vmem>>, %arg4: memref<1x8x288xf32, #tpu.memory_space<vmem>>) attributes {dimension_semantics = [#tpu.dimension_semantics<parallel>], iteration_bounds = array<i64: 2>, scalar_prefetch = 0 : i64, scratch_operands = 0 : i64, tpu.core_type = #tpu.core_type<tc>, window_params = [{transform_indices = @transform_0, window_bounds = array<i64: 1, 4, 342>}, {pipeline_mode = #tpu.pipeline_mode<synchronous>, transform_indices = @transform_1, window_bounds = array<i64: 9, 8, 4>}, {pipeline_mode = #tpu.pipeline_mode<synchronous>, transform_indices = @transform_2, window_bounds = array<i64: 8, 1>}, {transform_indices = @transform_3, window_bounds = array<i64: 1, 8, 288>}]} {
    %c0 = arith.constant 0 : index
    %c0_0 = arith.constant 0 : index
    %c0_1 = arith.constant 0 : index
    %0 = vector.load %arg1[%c0, %c0_0, %c0_1] : memref<1x4x342xbf16, #tpu.memory_space<vmem>>, vector<1x4x342xbf16>
    %1 = vector.shape_cast %0 : vector<1x4x342xbf16> to vector<4x342xbf16>
    %cst = arith.constant 0.000000e+00 : f32
    %2 = vector.broadcast %cst : f32 to vector<8x288xf32>
    %c0_2 = arith.constant 0 : index
    %c0_3 = arith.constant 0 : index
    %c0_4 = arith.constant 0 : index
    %3 = vector.load %arg2[%c0_2, %c0_3, %c0_4] : memref<9x8x4xbf16, #tpu.memory_space<vmem>>, vector<1x8x4xbf16>
    %4 = vector.shape_cast %3 : vector<1x8x4xbf16> to vector<8x4xbf16>
    %5 = vector.extract_strided_slice %1 {offsets = [0, 0], sizes = [4, 288], strides = [1, 1]} : vector<4x342xbf16> to vector<4x288xbf16>
    %cst_5 = arith.constant dense<0.000000e+00> : vector<8x288xf32>
    %6 = tpu.matmul %4, %5, %cst_5 {dimension_numbers = #tpu.dot_dimension_numbers<[1], [0], [0], [1], [0, 0, 1, 1], [], []>} : vector<8x4xbf16>, vector<4x288xbf16>, vector<8x288xf32> -> vector<8x288xf32>
    %7 = arith.addf %2, %6 : vector<8x288xf32>
    %c1 = arith.constant 1 : index
    %c0_6 = arith.constant 0 : index
    %c0_7 = arith.constant 0 : index
    %8 = vector.load %arg2[%c1, %c0_6, %c0_7] : memref<9x8x4xbf16, #tpu.memory_space<vmem>>, vector<1x8x4xbf16>
    %9 = vector.shape_cast %8 : vector<1x8x4xbf16> to vector<8x4xbf16>
    %10 = vector.extract_strided_slice %1 {offsets = [0, 1], sizes = [4, 288], strides = [1, 1]} : vector<4x342xbf16> to vector<4x288xbf16>
    %cst_8 = arith.constant dense<0.000000e+00> : vector<8x288xf32>
    %11 = tpu.matmul %9, %10, %cst_8 {dimension_numbers = #tpu.dot_dimension_numbers<[1], [0], [0], [1], [0, 0, 1, 1], [], []>} : vector<8x4xbf16>, vector<4x288xbf16>, vector<8x288xf32> -> vector<8x288xf32>
    %12 = arith.addf %7, %11 : vector<8x288xf32>
    %c2 = arith.constant 2 : index
    %c0_9 = arith.constant 0 : index
    %c0_10 = arith.constant 0 : index
    %13 = vector.load %arg2[%c2, %c0_9, %c0_10] : memref<9x8x4xbf16, #tpu.memory_space<vmem>>, vector<1x8x4xbf16>
    %14 = vector.shape_cast %13 : vector<1x8x4xbf16> to vector<8x4xbf16>
    %15 = vector.extract_strided_slice %1 {offsets = [0, 2], sizes = [4, 288], strides = [1, 1]} : vector<4x342xbf16> to vector<4x288xbf16>
    %cst_11 = arith.constant dense<0.000000e+00> : vector<8x288xf32>
    %16 = tpu.matmul %14, %15, %cst_11 {dimension_numbers = #tpu.dot_dimension_numbers<[1], [0], [0], [1], [0, 0, 1, 1], [], []>} : vector<8x4xbf16>, vector<4x288xbf16>, vector<8x288xf32> -> vector<8x288xf32>
    %17 = arith.addf %12, %16 : vector<8x288xf32>
    %c3 = arith.constant 3 : index
    %c0_12 = arith.constant 0 : index
    %c0_13 = arith.constant 0 : index
    %18 = vector.load %arg2[%c3, %c0_12, %c0_13] : memref<9x8x4xbf16, #tpu.memory_space<vmem>>, vector<1x8x4xbf16>
    %19 = vector.shape_cast %18 : vector<1x8x4xbf16> to vector<8x4xbf16>
    %20 = vector.extract_strided_slice %1 {offsets = [0, 18], sizes = [4, 288], strides = [1, 1]} : vector<4x342xbf16> to vector<4x288xbf16>
    %cst_14 = arith.constant dense<0.000000e+00> : vector<8x288xf32>
    %21 = tpu.matmul %19, %20, %cst_14 {dimension_numbers = #tpu.dot_dimension_numbers<[1], [0], [0], [1], [0, 0, 1, 1], [], []>} : vector<8x4xbf16>, vector<4x288xbf16>, vector<8x288xf32> -> vector<8x288xf32>
    %22 = arith.addf %17, %21 : vector<8x288xf32>
    %c4 = arith.constant 4 : index
    %c0_15 = arith.constant 0 : index
    %c0_16 = arith.constant 0 : index
    %23 = vector.load %arg2[%c4, %c0_15, %c0_16] : memref<9x8x4xbf16, #tpu.memory_space<vmem>>, vector<1x8x4xbf16>
    %24 = vector.shape_cast %23 : vector<1x8x4xbf16> to vector<8x4xbf16>
    %25 = vector.extract_strided_slice %1 {offsets = [0, 19], sizes = [4, 288], strides = [1, 1]} : vector<4x342xbf16> to vector<4x288xbf16>
    %cst_17 = arith.constant dense<0.000000e+00> : vector<8x288xf32>
    %26 = tpu.matmul %24, %25, %cst_17 {dimension_numbers = #tpu.dot_dimension_numbers<[1], [0], [0], [1], [0, 0, 1, 1], [], []>} : vector<8x4xbf16>, vector<4x288xbf16>, vector<8x288xf32> -> vector<8x288xf32>
    %27 = arith.addf %22, %26 : vector<8x288xf32>
    %c5 = arith.constant 5 : index
    %c0_18 = arith.constant 0 : index
    %c0_19 = arith.constant 0 : index
    %28 = vector.load %arg2[%c5, %c0_18, %c0_19] : memref<9x8x4xbf16, #tpu.memory_space<vmem>>, vector<1x8x4xbf16>
    %29 = vector.shape_cast %28 : vector<1x8x4xbf16> to vector<8x4xbf16>
    %30 = vector.extract_strided_slice %1 {offsets = [0, 20], sizes = [4, 288], strides = [1, 1]} : vector<4x342xbf16> to vector<4x288xbf16>
    %cst_20 = arith.constant dense<0.000000e+00> : vector<8x288xf32>
    %31 = tpu.matmul %29, %30, %cst_20 {dimension_numbers = #tpu.dot_dimension_numbers<[1], [0], [0], [1], [0, 0, 1, 1], [], []>} : vector<8x4xbf16>, vector<4x288xbf16>, vector<8x288xf32> -> vector<8x288xf32>
    %32 = arith.addf %27, %31 : vector<8x288xf32>
    %c6 = arith.constant 6 : index
    %c0_21 = arith.constant 0 : index
    %c0_22 = arith.constant 0 : index
    %33 = vector.load %arg2[%c6, %c0_21, %c0_22] : memref<9x8x4xbf16, #tpu.memory_space<vmem>>, vector<1x8x4xbf16>
    %34 = vector.shape_cast %33 : vector<1x8x4xbf16> to vector<8x4xbf16>
    %35 = vector.extract_strided_slice %1 {offsets = [0, 36], sizes = [4, 288], strides = [1, 1]} : vector<4x342xbf16> to vector<4x288xbf16>
    %cst_23 = arith.constant dense<0.000000e+00> : vector<8x288xf32>
    %36 = tpu.matmul %34, %35, %cst_23 {dimension_numbers = #tpu.dot_dimension_numbers<[1], [0], [0], [1], [0, 0, 1, 1], [], []>} : vector<8x4xbf16>, vector<4x288xbf16>, vector<8x288xf32> -> vector<8x288xf32>
    %37 = arith.addf %32, %36 : vector<8x288xf32>
    %c7 = arith.constant 7 : index
    %c0_24 = arith.constant 0 : index
    %c0_25 = arith.constant 0 : index
    %38 = vector.load %arg2[%c7, %c0_24, %c0_25] : memref<9x8x4xbf16, #tpu.memory_space<vmem>>, vector<1x8x4xbf16>
    %39 = vector.shape_cast %38 : vector<1x8x4xbf16> to vector<8x4xbf16>
    %40 = vector.extract_strided_slice %1 {offsets = [0, 37], sizes = [4, 288], strides = [1, 1]} : vector<4x342xbf16> to vector<4x288xbf16>
    %cst_26 = arith.constant dense<0.000000e+00> : vector<8x288xf32>
    %41 = tpu.matmul %39, %40, %cst_26 {dimension_numbers = #tpu.dot_dimension_numbers<[1], [0], [0], [1], [0, 0, 1, 1], [], []>} : vector<8x4xbf16>, vector<4x288xbf16>, vector<8x288xf32> -> vector<8x288xf32>
    %42 = arith.addf %37, %41 : vector<8x288xf32>
    %c8 = arith.constant 8 : index
    %c0_27 = arith.constant 0 : index
    %c0_28 = arith.constant 0 : index
    %43 = vector.load %arg2[%c8, %c0_27, %c0_28] : memref<9x8x4xbf16, #tpu.memory_space<vmem>>, vector<1x8x4xbf16>
    %44 = vector.shape_cast %43 : vector<1x8x4xbf16> to vector<8x4xbf16>
    %45 = vector.extract_strided_slice %1 {offsets = [0, 38], sizes = [4, 288], strides = [1, 1]} : vector<4x342xbf16> to vector<4x288xbf16>
    %cst_29 = arith.constant dense<0.000000e+00> : vector<8x288xf32>
    %46 = tpu.matmul %44, %45, %cst_29 {dimension_numbers = #tpu.dot_dimension_numbers<[1], [0], [0], [1], [0, 0, 1, 1], [], []>} : vector<8x4xbf16>, vector<4x288xbf16>, vector<8x288xf32> -> vector<8x288xf32>
    %47 = arith.addf %42, %46 : vector<8x288xf32>
    %c0_30 = arith.constant 0 : index
    %c0_31 = arith.constant 0 : index
    %48 = vector.load %arg3[%c0_30, %c0_31] : memref<8x1xf32, #tpu.memory_space<vmem>>, vector<8x1xf32>
    %49 = vector.broadcast %48 : vector<8x1xf32> to vector<8x288xf32>
    %50 = arith.addf %47, %49 : vector<8x288xf32>
    %cst_32 = arith.constant 5.000000e-01 : f32
    %51 = vector.broadcast %cst_32 : f32 to vector<8x288xf32>
    %52 = arith.mulf %51, %50 : vector<8x288xf32>
    %53 = arith.mulf %50, %50 : vector<8x288xf32>
    %54 = arith.mulf %53, %50 : vector<8x288xf32>
    %cst_33 = arith.constant 4.471500e-02 : f32
    %55 = vector.broadcast %cst_33 : f32 to vector<8x288xf32>
    %56 = arith.mulf %55, %54 : vector<8x288xf32>
    %57 = arith.addf %50, %56 : vector<8x288xf32>
    %cst_34 = arith.constant 0.797884583 : f32
    %58 = vector.broadcast %cst_34 : f32 to vector<8x288xf32>
    %59 = arith.mulf %58, %57 : vector<8x288xf32>
    %60 = math.tanh %59 : vector<8x288xf32>
    %cst_35 = arith.constant 1.000000e+00 : f32
    %61 = vector.broadcast %cst_35 : f32 to vector<8x288xf32>
    %62 = arith.addf %61, %60 : vector<8x288xf32>
    %63 = arith.mulf %52, %62 : vector<8x288xf32>
    %c0_36 = arith.constant 0 : index
    %c0_37 = arith.constant 0 : index
    %c0_38 = arith.constant 0 : index
    %64 = vector.load %arg4[%c0_36, %c0_37, %c0_38] : memref<1x8x288xf32, #tpu.memory_space<vmem>>, vector<1x8x288xf32>
    %65 = vector.shape_cast %64 : vector<1x8x288xf32> to vector<8x288xf32>
    %66 = vector.shape_cast %63 : vector<8x288xf32> to vector<1x8x288xf32>
    tpu.vector_store %arg4[%c0_36, %c0_37, %c0_38], %66 {strides = array<i32>} : memref<1x8x288xf32, #tpu.memory_space<vmem>>, vector<1x8x288xf32>,
    return
  }
  func.func @transform_0(%arg0: i32) -> (i32, i32, i32) {
    %c0_i32 = arith.constant 0 : i32
    %c0_i32_0 = arith.constant 0 : i32
    %c0_i32_1 = arith.constant 0 : i32
    return %arg0, %c0_i32, %c0_i32_0 : i32, i32, i32
  }
  func.func @transform_1(%arg0: i32) -> (i32, i32, i32) {
    %c0_i32 = arith.constant 0 : i32
    %c0_i32_0 = arith.constant 0 : i32
    %c0_i32_1 = arith.constant 0 : i32
    %c0_i32_2 = arith.constant 0 : i32
    return %c0_i32, %c0_i32_0, %c0_i32_1 : i32, i32, i32
  }
  func.func @transform_2(%arg0: i32) -> (i32, i32) {
    %c0_i32 = arith.constant 0 : i32
    %c0_i32_0 = arith.constant 0 : i32
    %c0_i32_1 = arith.constant 0 : i32
    return %c0_i32, %c0_i32_0 : i32, i32
  }
  func.func @transform_3(%arg0: i32) -> (i32, i32, i32) {
    %c0_i32 = arith.constant 0 : i32
    %c0_i32_0 = arith.constant 0 : i32
    %c0_i32_1 = arith.constant 0 : i32
    return %arg0, %c0_i32, %c0_i32_0 : i32, i32, i32
  }
}

</mosaic_0001>

<llo_original>
// kernel: tpu_custom_call.1
$region0: #{tpu_custom_call.1}
  #allocation0 [shape = 'u32[]', space=smem, size = 0x4, offset = 0x4, fixed_abs, tag = 'smem constant byte address 0x4 - core index']
  #allocation1 [shape = 'u32[144,128]{1,0:T(1,128)}', space=vmem, size = 0x12000, scoped, tag = 'internal scratch']
  %s0 = inlined_call_operand.vmem [shape: bf16[2,4,342], index: 0, kind: input, shape index: {}]
  %s1 = inlined_call_operand.vmem [shape: bf16[9,8,4], index: 1, kind: input, shape index: {}]
  %s2 = inlined_call_operand.vmem [shape: f32[8,1], index: 2, kind: input, shape index: {}]
  %s3 = inlined_call_operand.hbm [shape: f32[2,8,288], index: 3, kind: output, shape index: {}]
  %s4 = sld [smem:[#allocation0]]
  $region45: #{tpu_custom_call.1} parent=0
    _
  %s6 = ssub.s32 1, %s4
  %s7 = scalar_select 0, %s6, %s4
  $region1: #{tpu_custom_call.1} parent=0
    #allocation2 [shape = 'u8[24576]{0}', space=vmem, size = 0x6000, scoped, tag = 'output window, operand 0']
    #allocation3 [shape = 's32[2]{0}', space=sflag, size = 0x8, scoped, tag = 'scoped memory for tpu_custom_call.1']
    %8 = vsyncpa [#allocation3], 0
    %s9 = scalar_lea.sflag [#allocation3], 1
    %10 = vsyncpa %s9, 0
    loop: start=0, step=1, limit=4
    $region2: #{tpu_custom_call.1} parent=1 // loop_pre_header
      _
    $region3: #{tpu_custom_call.1} parent=1 // loop_header
      %s12 = sphi 0, %s16
      %p13 = scmp.ge.s32.totalorder %s12, 4
      %s22 = sphi 0, %s24
      %s25 = sphi 0, %s22
      %s26 = sphi 0, %s25
      %s42 = sphi 0, %s26
      %s46 = sphi 0, %s46
      %s48 = sphi 0, %s46
      %s49 = sphi 0, %s48
      %s63 = sphi 0, %s49
      %s67 = sphi 0, %s67
      %s69 = sphi 0, %s67
      %s70 = sphi 0, %s69
      %s84 = sphi 0, %s70
      %s90 = sphi 0, %s92
      %s93 = sphi 0, %s90
      %s94 = sphi 0, %s93
      %s110 = sphi 0, %s94
    $region4: #{tpu_custom_call.1} parent=1 // loop_header_branch
      %15 = sbr.rel (%p13) target = $region8
    $region5: #{tpu_custom_call.1} parent=1 // loop_body
      %s17 = ssub.s32 %s12, 1
      %s18 = ssub.s32 %s12, 2
      %s19 = sadd.s32 %s12, 1
      %s20 = ssub.s32 %s12, %s19
      %p21 = scmp.eq.s32.totalorder %s20, 0
      %s23 = sadd.s32 %s22, 1
      %s24 = scalar_select %p21, %s22, %s23
      %p27 = pneg %p21
      %p28 = scmp.eq.s32.totalorder %s12, 1
      %p29 = por %p27, %p28
      %p30 = scmp.ne.s32.totalorder %s22, %s25
      %p31 = scmp.eq.s32.totalorder %s12, 0
      %p32 = por %p30, %p31
      %p33 = scmp.ne.s32.totalorder %s22, %s25
      %p34 = scmp.eq.s32.totalorder %s17, 1
      %p35 = por %p33, %p34
      %p36 = scmp.ne.s32.totalorder %s25, %s26
      %p37 = scmp.eq.s32.totalorder %s17, 0
      %p38 = por %p36, %p37
      %p39 = scmp.ne.s32.totalorder %s25, %s26
      %p40 = scmp.eq.s32.totalorder %s18, 1
      %p41 = por %p39, %p40
      %p43 = scmp.ne.s32.totalorder %s26, %s42
      %p44 = scmp.eq.s32.totalorder %s18, 0
      %p45 = por %p43, %p44
      %s47 = sadd.s32 %s46, 1
      %p50 = scmp.eq.s32.totalorder %s12, 1
      %p51 = scmp.ne.s32.totalorder %s46, %s48
      %p52 = scmp.eq.s32.totalorder %s12, 0
      %p53 = por %p51, %p52
      %p54 = scmp.ne.s32.totalorder %s46, %s48
      %p55 = scmp.eq.s32.totalorder %s17, 1
      %p56 = por %p54, %p55
      %p57 = scmp.ne.s32.totalorder %s48, %s49
      %p58 = scmp.eq.s32.totalorder %s17, 0
      %p59 = por %p57, %p58
      %p60 = scmp.ne.s32.totalorder %s48, %s49
      %p61 = scmp.eq.s32.totalorder %s18, 1
      %p62 = por %p60, %p61
      %p64 = scmp.ne.s32.totalorder %s49, %s63
      %p65 = scmp.eq.s32.totalorder %s18, 0
      %p66 = por %p64, %p65
      %s68 = sadd.s32 %s67, 1
      %p71 = scmp.eq.s32.totalorder %s12, 1
      %p72 = scmp.ne.s32.totalorder %s67, %s69
      %p73 = scmp.eq.s32.totalorder %s12, 0
      %p74 = por %p72, %p73
      %p75 = scmp.ne.s32.totalorder %s67, %s69
      %p76 = scmp.eq.s32.totalorder %s17, 1
      %p77 = por %p75, %p76
      %p78 = scmp.ne.s32.totalorder %s69, %s70
      %p79 = scmp.eq.s32.totalorder %s17, 0
      %p80 = por %p78, %p79
      %p81 = scmp.ne.s32.totalorder %s69, %s70
      %p82 = scmp.eq.s32.totalorder %s18, 1
      %p83 = por %p81, %p82
      %p85 = scmp.ne.s32.totalorder %s70, %s84
      %p86 = scmp.eq.s32.totalorder %s18, 0
      %p87 = por %p85, %p86
      %s88 = ssub.s32 %s12, %s19
      %p89 = scmp.eq.s32.totalorder %s88, 0
      %s91 = sadd.s32 %s90, 1
      %s92 = scalar_select %p89, %s90, %s91
      %p95 = pneg %p89
      %p96 = scmp.eq.s32.totalorder %s12, 1
      %p97 = por %p95, %p96
      %p98 = scmp.ne.s32.totalorder %s90, %s93
      %p99 = scmp.eq.s32.totalorder %s12, 0
      %p100 = por %p98, %p99
      %p101 = scmp.ne.s32.totalorder %s90, %s93
      %p102 = scmp.eq.s32.totalorder %s17, 1
      %p103 = por %p101, %p102
      %p104 = scmp.ne.s32.totalorder %s93, %s94
      %p105 = scmp.eq.s32.totalorder %s17, 0
      %p106 = por %p104, %p105
      %p107 = scmp.ne.s32.totalorder %s93, %s94
      %p108 = scmp.eq.s32.totalorder %s18, 1
      %p109 = por %p107, %p108
      %p111 = scmp.ne.s32.totalorder %s94, %s110
      %p112 = scmp.eq.s32.totalorder %s18, 0
      %p113 = por %p111, %p112
      %p114 = scmp.le.s32.totalorder 1, %s12
      %p115 = scmp.lt.s32.totalorder %s12, 3
      %p116 = pnand %p114, %p115
      %p117 = pneg %p116
      // Predicated region
      $region9: #{tpu_custom_call.1} parent=5 // pred_check
        _
      $region10: #{tpu_custom_call.1} parent=5 // pred_check_branch
        %119 = sbr.rel (%p116) target = $region12
      $region11: #{tpu_custom_call.1} parent=5 // pred_region
        %s120 = ssub.s32 %s12, 1
        // Predicated region
        $region13: #{tpu_custom_call.1} parent=11 // pred_check
          %p121 = pneg %p59
        $region14: #{tpu_custom_call.1} parent=11 // pred_check_branch
          %123 = sbr.rel (%p121) target = $region16
        $region15: #{tpu_custom_call.1} parent=11 // pred_region
          _
        $region16: #{tpu_custom_call.1} parent=11 // pred_fallthru
          _
        // Predicated region
        $region17: #{tpu_custom_call.1} parent=11 // pred_check
          %p124 = pneg %p80
        $region18: #{tpu_custom_call.1} parent=11 // pred_check_branch
          %126 = sbr.rel (%p124) target = $region20
        $region19: #{tpu_custom_call.1} parent=11 // pred_region
          _
        $region20: #{tpu_custom_call.1} parent=11 // pred_fallthru
          _
      $region12: #{tpu_custom_call.1} parent=5 // pred_fallthru
        _
      %p127 = scmp.lt.s32.totalorder %s12, 2
      // Predicated region
      $region21: #{tpu_custom_call.1} parent=5 // pred_check
        %p128 = pneg %p127
      $region22: #{tpu_custom_call.1} parent=5 // pred_check_branch
        %130 = sbr.rel (%p128) target = $region24
      $region23: #{tpu_custom_call.1} parent=5 // pred_region
        // Predicated region
        $region25: #{tpu_custom_call.1} parent=23 // pred_check
          %p131 = pneg %p32
        $region26: #{tpu_custom_call.1} parent=23 // pred_check_branch
          %133 = sbr.rel (%p131) target = $region28
        $region27: #{tpu_custom_call.1} parent=23 // pred_region
          %p134 = scmp.lt.s32.totalorder %s12, 1
          %s135 = scalar_select %p134, %s12, 1
          %s136 = smul.addr %s135, 3
          %s137 = smul.addr %s136, 2
          %s138 = scalar_lea.vmem %s0, %s137
        $region28: #{tpu_custom_call.1} parent=23 // pred_fallthru
          _
      $region24: #{tpu_custom_call.1} parent=5 // pred_fallthru
        _
      %p139 = scmp.le.s32.totalorder 1, %s12
      %p140 = scmp.lt.s32.totalorder %s12, 3
      %p141 = pnand %p139, %p140
      %p142 = pneg %p141
      // Predicated region
      $region29: #{tpu_custom_call.1} parent=5 // pred_check
        _
      $region30: #{tpu_custom_call.1} parent=5 // pred_check_branch
        %144 = sbr.rel (%p141) target = $region32
      $region31: #{tpu_custom_call.1} parent=5 // pred_region
        %s145 = ssub.s32 %s12, 1
        %p146 = scmp.lt.s32.totalorder %s17, 1
        %s147 = scalar_select %p146, %s17, 1
        %s148 = smul.addr %s147, 3
        %s149 = smul.addr %s148, 2
        %s150 = scalar_lea.vmem %s0, %s149
        %p151 = pneg %p38
        %p152 = pneg %p35
        %p153 = pneg %p59
        %p154 = pneg %p56
        %p155 = pneg %p80
        %p156 = pneg %p77
        %p157 = pneg %p106
        %p158 = pneg %p103
        %s159 = sand.u32 %s93, 1
        %s160 = scalar_lea.sflag [#allocation3], %s159
        %s161 = sand.u32 %s93, 1
        %s162 = smul.addr %s161, 24
        %s163 = scalar_lea.vmem [#allocation2], %s162
        %p164 = scmp.lt.s32.totalorder %s17, 1
        %s165 = scalar_select %p164, %s17, 1
        %s166 = smul.addr %s165, 3
        %s167 = smul.addr %s166, 2
        %s168 = scalar_lea.vmem %s0, %s167
        %v170 = vld [vmem:[%s168] sm:$0x3f]
        %v171 = vld [vmem:[%s1] sm:$0xf]
        %s172 = scalar_lea.vmem %s1, 4
        %v173 = vld [vmem:[%s172] sm:$0xf]
        %v175 = vcombine.high %v170, %v170
        %v177 = vunpack.c.l.s4 1983009808
        %v178 = vunpack.c.0.s8 %v177
        %v179 = vlaneseq
        %v180 = vshrl.u32 %v179, 7
        %v181 = vsub.s32 %v178, %v180
        %v182 = vrot.slane %v170, %v181
        %v184 = vunpack.c.l.s4 1983009808
        %v185 = vunpack.c.0.s8 %v184
        %v186 = vlaneseq
        %v187 = vshrl.u32 %v186, 7
        %v188 = vsub.s32 %v185, %v187
        %v189 = vrot.slane %v175, %v188
        %v190 = vcombine.high %v182, %v182
        %191 = vrot.lane.b32.xlu0 %v182, 127
        %v192 = vpop.permute.xlu0 %191
        %193 = vrot.lane.b32.xlu0 %v190, 127
        %v194 = vpop.permute.xlu0 %193
        %195 = vrot.lane.b32.xlu0 %v189, 127
        %v196 = vpop.permute.xlu0 %195
        %vm197 = vcmask 1039360
        %v198 = vsel %vm197, %v192, %v194
        %v199 = vsel %vm197, %v194, %v196
        %vm200 = vcmask 31744
        %v202 = vsel %vm200, %v173, 0
        %vm204 = vcmask 1041408
        %v206 = vsel %vm204, %v198, 0
        %v209 = vsel %vm204, %v199, 0
        %v212 = vsel %vm204, %v196, 0
        %214 = vmatprep.subr.bf16.mxu0 %v209
        %215 = vmatpush1.bf16.msra.mxu0 %v206
        %216 = vmatprep.subr.bf16.mxu0 0
        %217 = vmatpush1.bf16.msra.mxu0 0
        %218 = vmatprep.subr.bf16.mxu0 0
        %219 = vmatpush1.bf16.msra.mxu0 0
        %220 = vmatprep.subr.bf16.mxu0 0
        %221 = vmatpush1.bf16.msra.mxu0 0
        %222 = vmatprep.subr.bf16.mxu0 0
        %223 = vmatpush1.bf16.msra.mxu0 0
        %224 = vmatprep.subr.bf16.mxu0 0
        %225 = vmatpush1.bf16.msra.mxu0 0
        %226 = vmatprep.subr.bf16.mxu0 0
        %227 = vmatpush1.bf16.msra.mxu0 0
        %228 = vmatprep.subr.bf16.mxu0 0
        %229 = vmatpush1.bf16.msra.mxu0 0
        %230 = vmatprep.subr.bf16.mxu0 0
        %231 = vmatpush1.bf16.msra.mxu0 0
        %232 = vmatprep.subr.bf16.mxu0 0
        %233 = vmatpush1.bf16.msra.mxu0 0
        %234 = vmatprep.subr.bf16.mxu0 0
        %235 = vmatpush1.bf16.msra.mxu0 0
        %236 = vmatprep.subr.bf16.mxu0 0
        %237 = vmatpush1.bf16.msra.mxu0 0
        %238 = vmatprep.subr.bf16.mxu0 0
        %239 = vmatpush1.bf16.msra.mxu0 0
        %240 = vmatprep.subr.bf16.mxu0 0
        %241 = vmatpush1.bf16.msra.mxu0 0
        %242 = vmatprep.subr.bf16.mxu0 0
        %243 = vmatpush1.bf16.msra.mxu0 0
        %244 = vmatprep.subr.bf16.mxu0 0
        %245 = vmatpush1.bf16.msra.mxu0 0
        %246 = vmatprep.mubr.bf16.mxu0 0
        %247 = vmatmul.mubr.bf16.gmra.mrb[0].mxu0 %v202
        %v248 = vpop.f32.mrb[0].mxu0
        %v249 = vadd.f32 0.0, %v248
        %v250 = vpop.f32.mrb[0].mxu0
        %v251 = vadd.f32 0.0, %v250
        %v252 = vpop.f32.mrb[0].mxu0
        %v253 = vpop.f32.mrb[0].mxu0
        %254 = vdwg.mxu0
        %255 = vmatprep.subr.bf16.mxu0 0
        %256 = vmatpush1.bf16.msra.mxu0 %v212
        %257 = vmatprep.subr.bf16.mxu0 0
        %258 = vmatpush1.bf16.msra.mxu0 0
        %259 = vmatprep.subr.bf16.mxu0 0
        %260 = vmatpush1.bf16.msra.mxu0 0
        %261 = vmatprep.subr.bf16.mxu0 0
        %262 = vmatpush1.bf16.msra.mxu0 0
        %263 = vmatprep.subr.bf16.mxu0 0
        %264 = vmatpush1.bf16.msra.mxu0 0
        %265 = vmatprep.subr.bf16.mxu0 0
        %266 = vmatpush1.bf16.msra.mxu0 0
        %267 = vmatprep.subr.bf16.mxu0 0
        %268 = vmatpush1.bf16.msra.mxu0 0
        %269 = vmatprep.subr.bf16.mxu0 0
        %270 = vmatpush1.bf16.msra.mxu0 0
        %271 = vmatprep.subr.bf16.mxu0 0
        %272 = vmatpush1.bf16.msra.mxu0 0
        %273 = vmatprep.subr.bf16.mxu0 0
        %274 = vmatpush1.bf16.msra.mxu0 0
        %275 = vmatprep.subr.bf16.mxu0 0
        %276 = vmatpush1.bf16.msra.mxu0 0
        %277 = vmatprep.subr.bf16.mxu0 0
        %278 = vmatpush1.bf16.msra.mxu0 0
        %279 = vmatprep.subr.bf16.mxu0 0
        %280 = vmatpush1.bf16.msra.mxu0 0
        %281 = vmatprep.subr.bf16.mxu0 0
        %282 = vmatpush1.bf16.msra.mxu0 0
        %283 = vmatprep.subr.bf16.mxu0 0
        %284 = vmatpush1.bf16.msra.mxu0 0
        %285 = vmatprep.subr.bf16.mxu0 0
        %286 = vmatpush1.bf16.msra.mxu0 0
        %287 = vmatprep.mubr.bf16.mxu0 0
        %288 = vmatmul.mubr.bf16.gmra.mrb[0].mxu0 %v202
        %v289 = vpop.f32.mrb[0].mxu0
        %v290 = vadd.f32 0.0, %v289
        %v291 = vpop.f32.mrb[0].mxu0
        %v292 = vpop.f32.mrb[0].mxu0
        %v293 = vpop.f32.mrb[0].mxu0
        %294 = vdwg.mxu0
        %v296 = vsel %vm200, %v171, 0
        %v299 = vsel %vm204, %v182, 0
        %v302 = vsel %vm204, %v190, 0
        %v305 = vsel %vm204, %v189, 0
        %307 = vmatprep.subr.bf16.mxu0 %v302
        %308 = vmatpush1.bf16.msra.mxu0 %v299
        %309 = vmatprep.subr.bf16.mxu0 0
        %310 = vmatpush1.bf16.msra.mxu0 0
        %311 = vmatprep.subr.bf16.mxu0 0
        %312 = vmatpush1.bf16.msra.mxu0 0
        %313 = vmatprep.subr.bf16.mxu0 0
        %314 = vmatpush1.bf16.msra.mxu0 0
        %315 = vmatprep.subr.bf16.mxu0 0
        %316 = vmatpush1.bf16.msra.mxu0 0
        %317 = vmatprep.subr.bf16.mxu0 0
        %318 = vmatpush1.bf16.msra.mxu0 0
        %319 = vmatprep.subr.bf16.mxu0 0
        %320 = vmatpush1.bf16.msra.mxu0 0
        %321 = vmatprep.subr.bf16.mxu0 0
        %322 = vmatpush1.bf16.msra.mxu0 0
        %323 = vmatprep.subr.bf16.mxu0 0
        %324 = vmatpush1.bf16.msra.mxu0 0
        %325 = vmatprep.subr.bf16.mxu0 0
        %326 = vmatpush1.bf16.msra.mxu0 0
        %327 = vmatprep.subr.bf16.mxu0 0
        %328 = vmatpush1.bf16.msra.mxu0 0
        %329 = vmatprep.subr.bf16.mxu0 0
        %330 = vmatpush1.bf16.msra.mxu0 0
        %331 = vmatprep.subr.bf16.mxu0 0
        %332 = vmatpush1.bf16.msra.mxu0 0
        %333 = vmatprep.subr.bf16.mxu0 0
        %334 = vmatpush1.bf16.msra.mxu0 0
        %335 = vmatprep.subr.bf16.mxu0 0
        %336 = vmatpush1.bf16.msra.mxu0 0
        %337 = vmatprep.subr.bf16.mxu0 0
        %338 = vmatpush1.bf16.msra.mxu0 0
        %339 = vmatprep.mubr.bf16.mxu0 0
        %340 = vmatmul.mubr.bf16.gmra.mrb[0].mxu0 %v296
        %v341 = vpop.f32.mrb[0].mxu0
        %v342 = vadd.f32 %v249, %v341
        %v343 = vpop.f32.mrb[0].mxu0
        %v344 = vadd.f32 %v251, %v343
        %v345 = vpop.f32.mrb[0].mxu0
        %v346 = vpop.f32.mrb[0].mxu0
        %347 = vdwg.mxu0
        %348 = vmatprep.subr.bf16.mxu0 0
        %349 = vmatpush1.bf16.msra.mxu0 %v305
        %350 = vmatprep.subr.bf16.mxu0 0
        %351 = vmatpush1.bf16.msra.mxu0 0
        %352 = vmatprep.subr.bf16.mxu0 0
        %353 = vmatpush1.bf16.msra.mxu0 0
        %354 = vmatprep.subr.bf16.mxu0 0
        %355 = vmatpush1.bf16.msra.mxu0 0
        %356 = vmatprep.subr.bf16.mxu0 0
        %357 = vmatpush1.bf16.msra.mxu0 0
        %358 = vmatprep.subr.bf16.mxu0 0
        %359 = vmatpush1.bf16.msra.mxu0 0
        %360 = vmatprep.subr.bf16.mxu0 0
        %361 = vmatpush1.bf16.msra.mxu0 0
        %362 = vmatprep.subr.bf16.mxu0 0
        %363 = vmatpush1.bf16.msra.mxu0 0
        %364 = vmatprep.subr.bf16.mxu0 0
        %365 = vmatpush1.bf16.msra.mxu0 0
        %366 = vmatprep.subr.bf16.mxu0 0
        %367 = vmatpush1.bf16.msra.mxu0 0
        %368 = vmatprep.subr.bf16.mxu0 0
        %369 = vmatpush1.bf16.msra.mxu0 0
        %370 = vmatprep.subr.bf16.mxu0 0
        %371 = vmatpush1.bf16.msra.mxu0 0
        %372 = vmatprep.subr.bf16.mxu0 0
        %373 = vmatpush1.bf16.msra.mxu0 0
        %374 = vmatprep.subr.bf16.mxu0 0
        %375 = vmatpush1.bf16.msra.mxu0 0
        %376 = vmatprep.subr.bf16.mxu0 0
        %377 = vmatpush1.bf16.msra.mxu0 0
        %378 = vmatprep.subr.bf16.mxu0 0
        %379 = vmatpush1.bf16.msra.mxu0 0
        %380 = vmatprep.mubr.bf16.mxu0 0
        %381 = vmatmul.mubr.bf16.gmra.mrb[0].mxu0 %v296
        %v382 = vpop.f32.mrb[0].mxu0
        %v383 = vadd.f32 %v290, %v382
        %v384 = vpop.f32.mrb[0].mxu0
        %v385 = vpop.f32.mrb[0].mxu0
        %v386 = vpop.f32.mrb[0].mxu0
        %387 = vdwg.mxu0
        %s388 = scalar_lea.vmem %s1, 8
        %v389 = vld [vmem:[%s388] sm:$0xf]
        %390 = vrot.lane.b32.xlu0 %v182, 126
        %v391 = vpop.permute.xlu0 %390
        %392 = vrot.lane.b32.xlu0 %v190, 126
        %v393 = vpop.permute.xlu0 %392
        %394 = vrot.lane.b32.xlu0 %v189, 126
        %v395 = vpop.permute.xlu0 %394
        %vm396 = vcmask 1031168
        %v397 = vsel %vm396, %v391, %v393
        %v398 = vsel %vm396, %v393, %v395
        %v400 = vsel %vm200, %v389, 0
        %v403 = vsel %vm204, %v397, 0
        %v406 = vsel %vm204, %v398, 0
        %v409 = vsel %vm204, %v395, 0
        %411 = vmatprep.subr.bf16.mxu0 %v406
        %412 = vmatpush1.bf16.msra.mxu0 %v403
        %413 = vmatprep.subr.bf16.mxu0 0
        %414 = vmatpush1.bf16.msra.mxu0 0
        %415 = vmatprep.subr.bf16.mxu0 0
        %416 = vmatpush1.bf16.msra.mxu0 0
        %417 = vmatprep.subr.bf16.mxu0 0
        %418 = vmatpush1.bf16.msra.mxu0 0
        %419 = vmatprep.subr.bf16.mxu0 0
        %420 = vmatpush1.bf16.msra.mxu0 0
        %421 = vmatprep.subr.bf16.mxu0 0
        %422 = vmatpush1.bf16.msra.mxu0 0
        %423 = vmatprep.subr.bf16.mxu0 0
        %424 = vmatpush1.bf16.msra.mxu0 0
        %425 = vmatprep.subr.bf16.mxu0 0
        %426 = vmatpush1.bf16.msra.mxu0 0
        %427 = vmatprep.subr.bf16.mxu0 0
        %428 = vmatpush1.bf16.msra.mxu0 0
        %429 = vmatprep.subr.bf16.mxu0 0
        %430 = vmatpush1.bf16.msra.mxu0 0
        %431 = vmatprep.subr.bf16.mxu0 0
        %432 = vmatpush1.bf16.msra.mxu0 0
        %433 = vmatprep.subr.bf16.mxu0 0
        %434 = vmatpush1.bf16.msra.mxu0 0
        %435 = vmatprep.subr.bf16.mxu0 0
        %436 = vmatpush1.bf16.msra.mxu0 0
        %437 = vmatprep.subr.bf16.mxu0 0
        %438 = vmatpush1.bf16.msra.mxu0 0
        %439 = vmatprep.subr.bf16.mxu0 0
        %440 = vmatpush1.bf16.msra.mxu0 0
        %441 = vmatprep.subr.bf16.mxu0 0
        %442 = vmatpush1.bf16.msra.mxu0 0
        %443 = vmatprep.mubr.bf16.mxu0 0
        %444 = vmatmul.mubr.bf16.gmra.mrb[0].mxu0 %v400
        %v445 = vpop.f32.mrb[0].mxu0
        %v446 = vadd.f32 0.0, %v445
        %v447 = vpop.f32.mrb[0].mxu0
        %v448 = vadd.f32 0.0, %v447
        %v449 = vpop.f32.mrb[0].mxu0
        %v450 = vpop.f32.mrb[0].mxu0
        %451 = vdwg.mxu0
        %452 = vmatprep.subr.bf16.mxu0 0
        %453 = vmatpush1.bf16.msra.mxu0 %v409
        %454 = vmatprep.subr.bf16.mxu0 0
        %455 = vmatpush1.bf16.msra.mxu0 0
        %456 = vmatprep.subr.bf16.mxu0 0
        %457 = vmatpush1.bf16.msra.mxu0 0
        %458 = vmatprep.subr.bf16.mxu0 0
        %459 = vmatpush1.bf16.msra.mxu0 0
        %460 = vmatprep.subr.bf16.mxu0 0
        %461 = vmatpush1.bf16.msra.mxu0 0
        %462 = vmatprep.subr.bf16.mxu0 0
        %463 = vmatpush1.bf16.msra.mxu0 0
        %464 = vmatprep.subr.bf16.mxu0 0
        %465 = vmatpush1.bf16.msra.mxu0 0
        %466 = vmatprep.subr.bf16.mxu0 0
        %467 = vmatpush1.bf16.msra.mxu0 0
        %468 = vmatprep.subr.bf16.mxu0 0
        %469 = vmatpush1.bf16.msra.mxu0 0
        %470 = vmatprep.subr.bf16.mxu0 0
        %471 = vmatpush1.bf16.msra.mxu0 0
        %472 = vmatprep.subr.bf16.mxu0 0
        %473 = vmatpush1.bf16.msra.mxu0 0
        %474 = vmatprep.subr.bf16.mxu0 0
        %475 = vmatpush1.bf16.msra.mxu0 0
        %476 = vmatprep.subr.bf16.mxu0 0
        %477 = vmatpush1.bf16.msra.mxu0 0
        %478 = vmatprep.subr.bf16.mxu0 0
        %479 = vmatpush1.bf16.msra.mxu0 0
        %480 = vmatprep.subr.bf16.mxu0 0
        %481 = vmatpush1.bf16.msra.mxu0 0
        %482 = vmatprep.subr.bf16.mxu0 0
        %483 = vmatpush1.bf16.msra.mxu0 0
        %484 = vmatprep.mubr.bf16.mxu0 0
        %485 = vmatmul.mubr.bf16.gmra.mrb[0].mxu0 %v400
        %v486 = vpop.f32.mrb[0].mxu0
        %v487 = vadd.f32 0.0, %v486
        %v488 = vpop.f32.mrb[0].mxu0
        %v489 = vpop.f32.mrb[0].mxu0
        %v490 = vpop.f32.mrb[0].mxu0
        %491 = vdwg.mxu0
        %v492 = vadd.f32 %v342, %v446
        %v493 = vadd.f32 %v344, %v448
        %v494 = vadd.f32 %v383, %v487
        %s495 = scalar_lea.vmem %s1, 12
        %v496 = vld [vmem:[%s495] sm:$0xf]
        %497 = vrot.lane.b32.xlu0 %v182, 110
        %v498 = vpop.permute.xlu0 %497
        %499 = vrot.lane.b32.xlu0 %v190, 110
        %v500 = vpop.permute.xlu0 %499
        %501 = vrot.lane.b32.xlu0 %v189, 110
        %v502 = vpop.permute.xlu0 %501
        %vm503 = vcmask 900096
        %v504 = vsel %vm503, %v498, %v500
        %v505 = vsel %vm503, %v500, %v502
        %v507 = vsel %vm200, %v496, 0
        %v510 = vsel %vm204, %v504, 0
        %v513 = vsel %vm204, %v505, 0
        %v516 = vsel %vm204, %v502, 0
        %518 = vmatprep.subr.bf16.mxu0 %v513
        %519 = vmatpush1.bf16.msra.mxu0 %v510
        %520 = vmatprep.subr.bf16.mxu0 0
        %521 = vmatpush1.bf16.msra.mxu0 0
        %522 = vmatprep.subr.bf16.mxu0 0
        %523 = vmatpush1.bf16.msra.mxu0 0
        %524 = vmatprep.subr.bf16.mxu0 0
        %525 = vmatpush1.bf16.msra.mxu0 0
        %526 = vmatprep.subr.bf16.mxu0 0
        %527 = vmatpush1.bf16.msra.mxu0 0
        %528 = vmatprep.subr.bf16.mxu0 0
        %529 = vmatpush1.bf16.msra.mxu0 0
        %530 = vmatprep.subr.bf16.mxu0 0
        %531 = vmatpush1.bf16.msra.mxu0 0
        %532 = vmatprep.subr.bf16.mxu0 0
        %533 = vmatpush1.bf16.msra.mxu0 0
        %534 = vmatprep.subr.bf16.mxu0 0
        %535 = vmatpush1.bf16.msra.mxu0 0
        %536 = vmatprep.subr.bf16.mxu0 0
        %537 = vmatpush1.bf16.msra.mxu0 0
        %538 = vmatprep.subr.bf16.mxu0 0
        %539 = vmatpush1.bf16.msra.mxu0 0
        %540 = vmatprep.subr.bf16.mxu0 0
        %541 = vmatpush1.bf16.msra.mxu0 0
        %542 = vmatprep.subr.bf16.mxu0 0
        %543 = vmatpush1.bf16.msra.mxu0 0
        %544 = vmatprep.subr.bf16.mxu0 0
        %545 = vmatpush1.bf16.msra.mxu0 0
        %546 = vmatprep.subr.bf16.mxu0 0
        %547 = vmatpush1.bf16.msra.mxu0 0
        %548 = vmatprep.subr.bf16.mxu0 0
        %549 = vmatpush1.bf16.msra.mxu0 0
        %550 = vmatprep.mubr.bf16.mxu0 0
        %551 = vmatmul.mubr.bf16.gmra.mrb[0].mxu0 %v507
        %v552 = vpop.f32.mrb[0].mxu0
        %v553 = vadd.f32 0.0, %v552
        %v554 = vpop.f32.mrb[0].mxu0
        %v555 = vadd.f32 0.0, %v554
        %v556 = vpop.f32.mrb[0].mxu0
        %v557 = vpop.f32.mrb[0].mxu0
        %558 = vdwg.mxu0
        %559 = vmatprep.subr.bf16.mxu0 0
        %560 = vmatpush1.bf16.msra.mxu0 %v516
        %561 = vmatprep.subr.bf16.mxu0 0
        %562 = vmatpush1.bf16.msra.mxu0 0
        %563 = vmatprep.subr.bf16.mxu0 0
        %564 = vmatpush1.bf16.msra.mxu0 0
        %565 = vmatprep.subr.bf16.mxu0 0
        %566 = vmatpush1.bf16.msra.mxu0 0
        %567 = vmatprep.subr.bf16.mxu0 0
        %568 = vmatpush1.bf16.msra.mxu0 0
        %569 = vmatprep.subr.bf16.mxu0 0
        %570 = vmatpush1.bf16.msra.mxu0 0
        %571 = vmatprep.subr.bf16.mxu0 0
        %572 = vmatpush1.bf16.msra.mxu0 0
        %573 = vmatprep.subr.bf16.mxu0 0
        %574 = vmatpush1.bf16.msra.mxu0 0
        %575 = vmatprep.subr.bf16.mxu0 0
        %576 = vmatpush1.bf16.msra.mxu0 0
        %577 = vmatprep.subr.bf16.mxu0 0
        %578 = vmatpush1.bf16.msra.mxu0 0
        %579 = vmatprep.subr.bf16.mxu0 0
        %580 = vmatpush1.bf16.msra.mxu0 0
        %581 = vmatprep.subr.bf16.mxu0 0
        %582 = vmatpush1.bf16.msra.mxu0 0
        %583 = vmatprep.subr.bf16.mxu0 0
        %584 = vmatpush1.bf16.msra.mxu0 0
        %585 = vmatprep.subr.bf16.mxu0 0
        %586 = vmatpush1.bf16.msra.mxu0 0
        %587 = vmatprep.subr.bf16.mxu0 0
        %588 = vmatpush1.bf16.msra.mxu0 0
        %589 = vmatprep.subr.bf16.mxu0 0
        %590 = vmatpush1.bf16.msra.mxu0 0
        %591 = vmatprep.mubr.bf16.mxu0 0
        %592 = vmatmul.mubr.bf16.gmra.mrb[0].mxu0 %v507
        %v593 = vpop.f32.mrb[0].mxu0
        %v594 = vadd.f32 0.0, %v593
        %v595 = vpop.f32.mrb[0].mxu0
        %v596 = vpop.f32.mrb[0].mxu0
        %v597 = vpop.f32.mrb[0].mxu0
        %598 = vdwg.mxu0
        %v599 = vadd.f32 %v492, %v553
        %v600 = vadd.f32 %v493, %v555
        %v601 = vadd.f32 %v494, %v594
        %s602 = scalar_lea.vmem %s1, 16
        %v603 = vld [vmem:[%s602] sm:$0xf]
        %604 = vrot.lane.b32.xlu0 %v182, 109
        %v605 = vpop.permute.xlu0 %604
        %606 = vrot.lane.b32.xlu0 %v190, 109
        %v607 = vpop.permute.xlu0 %606
        %608 = vrot.lane.b32.xlu0 %v189, 109
        %v609 = vpop.permute.xlu0 %608
        %vm610 = vcmask 891904
        %v611 = vsel %vm610, %v605, %v607
        %v612 = vsel %vm610, %v607, %v609
        %v614 = vsel %vm200, %v603, 0
        %v617 = vsel %vm204, %v611, 0
        %v620 = vsel %vm204, %v612, 0
        %v623 = vsel %vm204, %v609, 0
        %625 = vmatprep.subr.bf16.mxu0 %v620
        %626 = vmatpush1.bf16.msra.mxu0 %v617
        %627 = vmatprep.subr.bf16.mxu0 0
        %628 = vmatpush1.bf16.msra.mxu0 0
        %629 = vmatprep.subr.bf16.mxu0 0
        %630 = vmatpush1.bf16.msra.mxu0 0
        %631 = vmatprep.subr.bf16.mxu0 0
        %632 = vmatpush1.bf16.msra.mxu0 0
        %633 = vmatprep.subr.bf16.mxu0 0
        %634 = vmatpush1.bf16.msra.mxu0 0
        %635 = vmatprep.subr.bf16.mxu0 0
        %636 = vmatpush1.bf16.msra.mxu0 0
        %637 = vmatprep.subr.bf16.mxu0 0
        %638 = vmatpush1.bf16.msra.mxu0 0
        %639 = vmatprep.subr.bf16.mxu0 0
        %640 = vmatpush1.bf16.msra.mxu0 0
        %641 = vmatprep.subr.bf16.mxu0 0
        %642 = vmatpush1.bf16.msra.mxu0 0
        %643 = vmatprep.subr.bf16.mxu0 0
        %644 = vmatpush1.bf16.msra.mxu0 0
        %645 = vmatprep.subr.bf16.mxu0 0
        %646 = vmatpush1.bf16.msra.mxu0 0
        %647 = vmatprep.subr.bf16.mxu0 0
        %648 = vmatpush1.bf16.msra.mxu0 0
        %649 = vmatprep.subr.bf16.mxu0 0
        %650 = vmatpush1.bf16.msra.mxu0 0
        %651 = vmatprep.subr.bf16.mxu0 0
        %652 = vmatpush1.bf16.msra.mxu0 0
        %653 = vmatprep.subr.bf16.mxu0 0
        %654 = vmatpush1.bf16.msra.mxu0 0
        %655 = vmatprep.subr.bf16.mxu0 0
        %656 = vmatpush1.bf16.msra.mxu0 0
        %657 = vmatprep.mubr.bf16.mxu0 0
        %658 = vmatmul.mubr.bf16.gmra.mrb[0].mxu0 %v614
        %v659 = vpop.f32.mrb[0].mxu0
        %v660 = vadd.f32 0.0, %v659
        %v661 = vpop.f32.mrb[0].mxu0
        %v662 = vadd.f32 0.0, %v661
        %v663 = vpop.f32.mrb[0].mxu0
        %v664 = vpop.f32.mrb[0].mxu0
        %665 = vdwg.mxu0
        %666 = vmatprep.subr.bf16.mxu0 0
        %667 = vmatpush1.bf16.msra.mxu0 %v623
        %668 = vmatprep.subr.bf16.mxu0 0
        %669 = vmatpush1.bf16.msra.mxu0 0
        %670 = vmatprep.subr.bf16.mxu0 0
        %671 = vmatpush1.bf16.msra.mxu0 0
        %672 = vmatprep.subr.bf16.mxu0 0
        %673 = vmatpush1.bf16.msra.mxu0 0
        %674 = vmatprep.subr.bf16.mxu0 0
        %675 = vmatpush1.bf16.msra.mxu0 0
        %676 = vmatprep.subr.bf16.mxu0 0
        %677 = vmatpush1.bf16.msra.mxu0 0
        %678 = vmatprep.subr.bf16.mxu0 0
        %679 = vmatpush1.bf16.msra.mxu0 0
        %680 = vmatprep.subr.bf16.mxu0 0
        %681 = vmatpush1.bf16.msra.mxu0 0
        %682 = vmatprep.subr.bf16.mxu0 0
        %683 = vmatpush1.bf16.msra.mxu0 0
        %684 = vmatprep.subr.bf16.mxu0 0
        %685 = vmatpush1.bf16.msra.mxu0 0
        %686 = vmatprep.subr.bf16.mxu0 0
        %687 = vmatpush1.bf16.msra.mxu0 0
        %688 = vmatprep.subr.bf16.mxu0 0
        %689 = vmatpush1.bf16.msra.mxu0 0
        %690 = vmatprep.subr.bf16.mxu0 0
        %691 = vmatpush1.bf16.msra.mxu0 0
        %692 = vmatprep.subr.bf16.mxu0 0
        %693 = vmatpush1.bf16.msra.mxu0 0
        %694 = vmatprep.subr.bf16.mxu0 0
        %695 = vmatpush1.bf16.msra.mxu0 0
        %696 = vmatprep.subr.bf16.mxu0 0
        %697 = vmatpush1.bf16.msra.mxu0 0
        %698 = vmatprep.mubr.bf16.mxu0 0
        %699 = vmatmul.mubr.bf16.gmra.mrb[0].mxu0 %v614
        %v700 = vpop.f32.mrb[0].mxu0
        %v701 = vadd.f32 0.0, %v700
        %v702 = vpop.f32.mrb[0].mxu0
        %v703 = vpop.f32.mrb[0].mxu0
        %v704 = vpop.f32.mrb[0].mxu0
        %705 = vdwg.mxu0
        %v706 = vadd.f32 %v599, %v660
        %v707 = vadd.f32 %v600, %v662
        %v708 = vadd.f32 %v601, %v701
        %s709 = scalar_lea.vmem %s1, 20
        %v710 = vld [vmem:[%s709] sm:$0xf]
        %711 = vrot.lane.b32.xlu0 %v182, 108
        %v712 = vpop.permute.xlu0 %711
        %713 = vrot.lane.b32.xlu0 %v190, 108
        %v714 = vpop.permute.xlu0 %713
        %715 = vrot.lane.b32.xlu0 %v189, 108
        %v716 = vpop.permute.xlu0 %715
        %vm717 = vcmask 883712
        %v718 = vsel %vm717, %v712, %v714
        %v719 = vsel %vm717, %v714, %v716
        %v721 = vsel %vm200, %v710, 0
        %v724 = vsel %vm204, %v718, 0
        %v727 = vsel %vm204, %v719, 0
        %v730 = vsel %vm204, %v716, 0
        %732 = vmatprep.subr.bf16.mxu0 %v727
        %733 = vmatpush1.bf16.msra.mxu0 %v724
        %734 = vmatprep.subr.bf16.mxu0 0
        %735 = vmatpush1.bf16.msra.mxu0 0
        %736 = vmatprep.subr.bf16.mxu0 0
        %737 = vmatpush1.bf16.msra.mxu0 0
        %738 = vmatprep.subr.bf16.mxu0 0
        %739 = vmatpush1.bf16.msra.mxu0 0
        %740 = vmatprep.subr.bf16.mxu0 0
        %741 = vmatpush1.bf16.msra.mxu0 0
        %742 = vmatprep.subr.bf16.mxu0 0
        %743 = vmatpush1.bf16.msra.mxu0 0
        %744 = vmatprep.subr.bf16.mxu0 0
        %745 = vmatpush1.bf16.msra.mxu0 0
        %746 = vmatprep.subr.bf16.mxu0 0
        %747 = vmatpush1.bf16.msra.mxu0 0
        %748 = vmatprep.subr.bf16.mxu0 0
        %749 = vmatpush1.bf16.msra.mxu0 0
        %750 = vmatprep.subr.bf16.mxu0 0
        %751 = vmatpush1.bf16.msra.mxu0 0
        %752 = vmatprep.subr.bf16.mxu0 0
        %753 = vmatpush1.bf16.msra.mxu0 0
        %754 = vmatprep.subr.bf16.mxu0 0
        %755 = vmatpush1.bf16.msra.mxu0 0
        %756 = vmatprep.subr.bf16.mxu0 0
        %757 = vmatpush1.bf16.msra.mxu0 0
        %758 = vmatprep.subr.bf16.mxu0 0
        %759 = vmatpush1.bf16.msra.mxu0 0
        %760 = vmatprep.subr.bf16.mxu0 0
        %761 = vmatpush1.bf16.msra.mxu0 0
        %762 = vmatprep.subr.bf16.mxu0 0
        %763 = vmatpush1.bf16.msra.mxu0 0
        %764 = vmatprep.mubr.bf16.mxu0 0
        %765 = vmatmul.mubr.bf16.gmra.mrb[0].mxu0 %v721
        %v766 = vpop.f32.mrb[0].mxu0
        %v767 = vadd.f32 0.0, %v766
        %v768 = vpop.f32.mrb[0].mxu0
        %v769 = vadd.f32 0.0, %v768
        %v770 = vpop.f32.mrb[0].mxu0
        %v771 = vpop.f32.mrb[0].mxu0
        %772 = vdwg.mxu0
        %773 = vmatprep.subr.bf16.mxu0 0
        %774 = vmatpush1.bf16.msra.mxu0 %v730
        %775 = vmatprep.subr.bf16.mxu0 0
        %776 = vmatpush1.bf16.msra.mxu0 0
        %777 = vmatprep.subr.bf16.mxu0 0
        %778 = vmatpush1.bf16.msra.mxu0 0
        %779 = vmatprep.subr.bf16.mxu0 0
        %780 = vmatpush1.bf16.msra.mxu0 0
        %781 = vmatprep.subr.bf16.mxu0 0
        %782 = vmatpush1.bf16.msra.mxu0 0
        %783 = vmatprep.subr.bf16.mxu0 0
        %784 = vmatpush1.bf16.msra.mxu0 0
        %785 = vmatprep.subr.bf16.mxu0 0
        %786 = vmatpush1.bf16.msra.mxu0 0
        %787 = vmatprep.subr.bf16.mxu0 0
        %788 = vmatpush1.bf16.msra.mxu0 0
        %789 = vmatprep.subr.bf16.mxu0 0
        %790 = vmatpush1.bf16.msra.mxu0 0
        %791 = vmatprep.subr.bf16.mxu0 0
        %792 = vmatpush1.bf16.msra.mxu0 0
        %793 = vmatprep.subr.bf16.mxu0 0
        %794 = vmatpush1.bf16.msra.mxu0 0
        %795 = vmatprep.subr.bf16.mxu0 0
        %796 = vmatpush1.bf16.msra.mxu0 0
        %797 = vmatprep.subr.bf16.mxu0 0
        %798 = vmatpush1.bf16.msra.mxu0 0
        %799 = vmatprep.subr.bf16.mxu0 0
        %800 = vmatpush1.bf16.msra.mxu0 0
        %801 = vmatprep.subr.bf16.mxu0 0
        %802 = vmatpush1.bf16.msra.mxu0 0
        %803 = vmatprep.subr.bf16.mxu0 0
        %804 = vmatpush1.bf16.msra.mxu0 0
        %805 = vmatprep.mubr.bf16.mxu0 0
        %806 = vmatmul.mubr.bf16.gmra.mrb[0].mxu0 %v721
        %v807 = vpop.f32.mrb[0].mxu0
        %v808 = vadd.f32 0.0, %v807
        %v809 = vpop.f32.mrb[0].mxu0
        %v810 = vpop.f32.mrb[0].mxu0
        %v811 = vpop.f32.mrb[0].mxu0
        %812 = vdwg.mxu0
        %v813 = vadd.f32 %v706, %v767
        %v814 = vadd.f32 %v707, %v769
        %v815 = vadd.f32 %v708, %v808
        %s816 = scalar_lea.vmem %s1, 24
        %v817 = vld [vmem:[%s816] sm:$0xf]
        %818 = vrot.lane.b32.xlu0 %v182, 92
        %v819 = vpop.permute.xlu0 %818
        %820 = vrot.lane.b32.xlu0 %v190, 92
        %v821 = vpop.permute.xlu0 %820
        %822 = vrot.lane.b32.xlu0 %v189, 92
        %v823 = vpop.permute.xlu0 %822
        %vm824 = vcmask 752640
        %v825 = vsel %vm824, %v819, %v821
        %v826 = vsel %vm824, %v821, %v823
        %v828 = vsel %vm200, %v817, 0
        %v831 = vsel %vm204, %v825, 0
        %v834 = vsel %vm204, %v826, 0
        %v837 = vsel %vm204, %v823, 0
        %839 = vmatprep.subr.bf16.mxu0 %v834
        %840 = vmatpush1.bf16.msra.mxu0 %v831
        %841 = vmatprep.subr.bf16.mxu0 0
        %842 = vmatpush1.bf16.msra.mxu0 0
        %843 = vmatprep.subr.bf16.mxu0 0
        %844 = vmatpush1.bf16.msra.mxu0 0
        %845 = vmatprep.subr.bf16.mxu0 0
        %846 = vmatpush1.bf16.msra.mxu0 0
        %847 = vmatprep.subr.bf16.mxu0 0
        %848 = vmatpush1.bf16.msra.mxu0 0
        %849 = vmatprep.subr.bf16.mxu0 0
        %850 = vmatpush1.bf16.msra.mxu0 0
        %851 = vmatprep.subr.bf16.mxu0 0
        %852 = vmatpush1.bf16.msra.mxu0 0
        %853 = vmatprep.subr.bf16.mxu0 0
        %854 = vmatpush1.bf16.msra.mxu0 0
        %855 = vmatprep.subr.bf16.mxu0 0
        %856 = vmatpush1.bf16.msra.mxu0 0
        %857 = vmatprep.subr.bf16.mxu0 0
        %858 = vmatpush1.bf16.msra.mxu0 0
        %859 = vmatprep.subr.bf16.mxu0 0
        %860 = vmatpush1.bf16.msra.mxu0 0
        %861 = vmatprep.subr.bf16.mxu0 0
        %862 = vmatpush1.bf16.msra.mxu0 0
        %863 = vmatprep.subr.bf16.mxu0 0
        %864 = vmatpush1.bf16.msra.mxu0 0
        %865 = vmatprep.subr.bf16.mxu0 0
        %866 = vmatpush1.bf16.msra.mxu0 0
        %867 = vmatprep.subr.bf16.mxu0 0
        %868 = vmatpush1.bf16.msra.mxu0 0
        %869 = vmatprep.subr.bf16.mxu0 0
        %870 = vmatpush1.bf16.msra.mxu0 0
        %871 = vmatprep.mubr.bf16.mxu0 0
        %872 = vmatmul.mubr.bf16.gmra.mrb[0].mxu0 %v828
        %v873 = vpop.f32.mrb[0].mxu0
        %v874 = vadd.f32 0.0, %v873
        %v875 = vpop.f32.mrb[0].mxu0
        %v876 = vadd.f32 0.0, %v875
        %v877 = vpop.f32.mrb[0].mxu0
        %v878 = vpop.f32.mrb[0].mxu0
        %879 = vdwg.mxu0
        %880 = vmatprep.subr.bf16.mxu0 0
        %881 = vmatpush1.bf16.msra.mxu0 %v837
        %882 = vmatprep.subr.bf16.mxu0 0
        %883 = vmatpush1.bf16.msra.mxu0 0
        %884 = vmatprep.subr.bf16.mxu0 0
        %885 = vmatpush1.bf16.msra.mxu0 0
        %886 = vmatprep.subr.bf16.mxu0 0
        %887 = vmatpush1.bf16.msra.mxu0 0
        %888 = vmatprep.subr.bf16.mxu0 0
        %889 = vmatpush1.bf16.msra.mxu0 0
        %890 = vmatprep.subr.bf16.mxu0 0
        %891 = vmatpush1.bf16.msra.mxu0 0
        %892 = vmatprep.subr.bf16.mxu0 0
        %893 = vmatpush1.bf16.msra.mxu0 0
        %894 = vmatprep.subr.bf16.mxu0 0
        %895 = vmatpush1.bf16.msra.mxu0 0
        %896 = vmatprep.subr.bf16.mxu0 0
        %897 = vmatpush1.bf16.msra.mxu0 0
        %898 = vmatprep.subr.bf16.mxu0 0
        %899 = vmatpush1.bf16.msra.mxu0 0
        %900 = vmatprep.subr.bf16.mxu0 0
        %901 = vmatpush1.bf16.msra.mxu0 0
        %902 = vmatprep.subr.bf16.mxu0 0
        %903 = vmatpush1.bf16.msra.mxu0 0
        %904 = vmatprep.subr.bf16.mxu0 0
        %905 = vmatpush1.bf16.msra.mxu0 0
        %906 = vmatprep.subr.bf16.mxu0 0
        %907 = vmatpush1.bf16.msra.mxu0 0
        %908 = vmatprep.subr.bf16.mxu0 0
        %909 = vmatpush1.bf16.msra.mxu0 0
        %910 = vmatprep.subr.bf16.mxu0 0
        %911 = vmatpush1.bf16.msra.mxu0 0
        %912 = vmatprep.mubr.bf16.mxu0 0
        %913 = vmatmul.mubr.bf16.gmra.mrb[0].mxu0 %v828
        %v914 = vpop.f32.mrb[0].mxu0
        %v915 = vadd.f32 0.0, %v914
        %v916 = vpop.f32.mrb[0].mxu0
        %v917 = vpop.f32.mrb[0].mxu0
        %v918 = vpop.f32.mrb[0].mxu0
        %919 = vdwg.mxu0
        %v920 = vadd.f32 %v813, %v874
        %v921 = vadd.f32 %v814, %v876
        %v922 = vadd.f32 %v815, %v915
        %s923 = scalar_lea.vmem %s1, 28
        %v924 = vld [vmem:[%s923] sm:$0xf]
        %925 = vrot.lane.b32.xlu0 %v182, 91
        %v926 = vpop.permute.xlu0 %925
        %927 = vrot.lane.b32.xlu0 %v190, 91
        %v928 = vpop.permute.xlu0 %927
        %929 = vrot.lane.b32.xlu0 %v189, 91
        %v930 = vpop.permute.xlu0 %929
        %vm931 = vcmask 744448
        %v932 = vsel %vm931, %v926, %v928
        %v933 = vsel %vm931, %v928, %v930
        %v935 = vsel %vm200, %v924, 0
        %v938 = vsel %vm204, %v932, 0
        %v941 = vsel %vm204, %v933, 0
        %v944 = vsel %vm204, %v930, 0
        %946 = vmatprep.subr.bf16.mxu0 %v941
        %947 = vmatpush1.bf16.msra.mxu0 %v938
        %948 = vmatprep.subr.bf16.mxu0 0
        %949 = vmatpush1.bf16.msra.mxu0 0
        %950 = vmatprep.subr.bf16.mxu0 0
        %951 = vmatpush1.bf16.msra.mxu0 0
        %952 = vmatprep.subr.bf16.mxu0 0
        %953 = vmatpush1.bf16.msra.mxu0 0
        %954 = vmatprep.subr.bf16.mxu0 0
        %955 = vmatpush1.bf16.msra.mxu0 0
        %956 = vmatprep.subr.bf16.mxu0 0
        %957 = vmatpush1.bf16.msra.mxu0 0
        %958 = vmatprep.subr.bf16.mxu0 0
        %959 = vmatpush1.bf16.msra.mxu0 0
        %960 = vmatprep.subr.bf16.mxu0 0
        %961 = vmatpush1.bf16.msra.mxu0 0
        %962 = vmatprep.subr.bf16.mxu0 0
        %963 = vmatpush1.bf16.msra.mxu0 0
        %964 = vmatprep.subr.bf16.mxu0 0
        %965 = vmatpush1.bf16.msra.mxu0 0
        %966 = vmatprep.subr.bf16.mxu0 0
        %967 = vmatpush1.bf16.msra.mxu0 0
        %968 = vmatprep.subr.bf16.mxu0 0
        %969 = vmatpush1.bf16.msra.mxu0 0
        %970 = vmatprep.subr.bf16.mxu0 0
        %971 = vmatpush1.bf16.msra.mxu0 0
        %972 = vmatprep.subr.bf16.mxu0 0
        %973 = vmatpush1.bf16.msra.mxu0 0
        %974 = vmatprep.subr.bf16.mxu0 0
        %975 = vmatpush1.bf16.msra.mxu0 0
        %976 = vmatprep.subr.bf16.mxu0 0
        %977 = vmatpush1.bf16.msra.mxu0 0
        %978 = vmatprep.mubr.bf16.mxu0 0
        %979 = vmatmul.mubr.bf16.gmra.mrb[0].mxu0 %v935
        %v980 = vpop.f32.mrb[0].mxu0
        %v981 = vadd.f32 0.0, %v980
        %v982 = vpop.f32.mrb[0].mxu0
        %v983 = vadd.f32 0.0, %v982
        %v984 = vpop.f32.mrb[0].mxu0
        %v985 = vpop.f32.mrb[0].mxu0
        %986 = vdwg.mxu0
        %987 = vmatprep.subr.bf16.mxu0 0
        %988 = vmatpush1.bf16.msra.mxu0 %v944
        %989 = vmatprep.subr.bf16.mxu0 0
        %990 = vmatpush1.bf16.msra.mxu0 0
        %991 = vmatprep.subr.bf16.mxu0 0
        %992 = vmatpush1.bf16.msra.mxu0 0
        %993 = vmatprep.subr.bf16.mxu0 0
        %994 = vmatpush1.bf16.msra.mxu0 0
        %995 = vmatprep.subr.bf16.mxu0 0
        %996 = vmatpush1.bf16.msra.mxu0 0
        %997 = vmatprep.subr.bf16.mxu0 0
        %998 = vmatpush1.bf16.msra.mxu0 0
        %999 = vmatprep.subr.bf16.mxu0 0
        %1000 = vmatpush1.bf16.msra.mxu0 0
        %1001 = vmatprep.subr.bf16.mxu0 0
        %1002 = vmatpush1.bf16.msra.mxu0 0
        %1003 = vmatprep.subr.bf16.mxu0 0
        %1004 = vmatpush1.bf16.msra.mxu0 0
        %1005 = vmatprep.subr.bf16.mxu0 0
        %1006 = vmatpush1.bf16.msra.mxu0 0
        %1007 = vmatprep.subr.bf16.mxu0 0
        %1008 = vmatpush1.bf16.msra.mxu0 0
        %1009 = vmatprep.subr.bf16.mxu0 0
        %1010 = vmatpush1.bf16.msra.mxu0 0
        %1011 = vmatprep.subr.bf16.mxu0 0
        %1012 = vmatpush1.bf16.msra.mxu0 0
        %1013 = vmatprep.subr.bf16.mxu0 0
        %1014 = vmatpush1.bf16.msra.mxu0 0
        %1015 = vmatprep.subr.bf16.mxu0 0
        %1016 = vmatpush1.bf16.msra.mxu0 0
        %1017 = vmatprep.subr.bf16.mxu0 0
        %1018 = vmatpush1.bf16.msra.mxu0 0
        %1019 = vmatprep.mubr.bf16.mxu0 0
        %1020 = vmatmul.mubr.bf16.gmra.mrb[0].mxu0 %v935
        %v1021 = vpop.f32.mrb[0].mxu0
        %v1022 = vadd.f32 0.0, %v1021
        %v1023 = vpop.f32.mrb[0].mxu0
        %v1024 = vpop.f32.mrb[0].mxu0
        %v1025 = vpop.f32.mrb[0].mxu0
        %1026 = vdwg.mxu0
        %v1027 = vadd.f32 %v920, %v981
        %v1028 = vadd.f32 %v921, %v983
        %v1029 = vadd.f32 %v922, %v1022
        %s1030 = scalar_lea.vmem %s1, 32
        %v1031 = vld [vmem:[%s1030] sm:$0xf]
        %1032 = vrot.lane.b32.xlu0 %v182, 90
        %v1033 = vpop.permute.xlu0 %1032
        %1034 = vrot.lane.b32.xlu0 %v190, 90
        %v1035 = vpop.permute.xlu0 %1034
        %1036 = vrot.lane.b32.xlu0 %v189, 90
        %v1037 = vpop.permute.xlu0 %1036
        %vm1038 = vcmask 736256
        %v1039 = vsel %vm1038, %v1033, %v1035
        %v1040 = vsel %vm1038, %v1035, %v1037
        %v1042 = vsel %vm200, %v1031, 0
        %v1045 = vsel %vm204, %v1039, 0
        %v1048 = vsel %vm204, %v1040, 0
        %v1051 = vsel %vm204, %v1037, 0
        %1053 = vmatprep.subr.bf16.mxu0 %v1048
        %1054 = vmatpush1.bf16.msra.mxu0 %v1045
        %1055 = vmatprep.subr.bf16.mxu0 0
        %1056 = vmatpush1.bf16.msra.mxu0 0
        %1057 = vmatprep.subr.bf16.mxu0 0
        %1058 = vmatpush1.bf16.msra.mxu0 0
        %1059 = vmatprep.subr.bf16.mxu0 0
        %1060 = vmatpush1.bf16.msra.mxu0 0
        %1061 = vmatprep.subr.bf16.mxu0 0
        %1062 = vmatpush1.bf16.msra.mxu0 0
        %1063 = vmatprep.subr.bf16.mxu0 0
        %1064 = vmatpush1.bf16.msra.mxu0 0
        %1065 = vmatprep.subr.bf16.mxu0 0
        %1066 = vmatpush1.bf16.msra.mxu0 0
        %1067 = vmatprep.subr.bf16.mxu0 0
        %1068 = vmatpush1.bf16.msra.mxu0 0
        %1069 = vmatprep.subr.bf16.mxu0 0
        %1070 = vmatpush1.bf16.msra.mxu0 0
        %1071 = vmatprep.subr.bf16.mxu0 0
        %1072 = vmatpush1.bf16.msra.mxu0 0
        %1073 = vmatprep.subr.bf16.mxu0 0
        %1074 = vmatpush1.bf16.msra.mxu0 0
        %1075 = vmatprep.subr.bf16.mxu0 0
        %1076 = vmatpush1.bf16.msra.mxu0 0
        %1077 = vmatprep.subr.bf16.mxu0 0
        %1078 = vmatpush1.bf16.msra.mxu0 0
        %1079 = vmatprep.subr.bf16.mxu0 0
        %1080 = vmatpush1.bf16.msra.mxu0 0
        %1081 = vmatprep.subr.bf16.mxu0 0
        %1082 = vmatpush1.bf16.msra.mxu0 0
        %1083 = vmatprep.subr.bf16.mxu0 0
        %1084 = vmatpush1.bf16.msra.mxu0 0
        %1085 = vmatprep.mubr.bf16.mxu0 0
        %1086 = vmatmul.mubr.bf16.gmra.mrb[0].mxu0 %v1042
        %v1087 = vpop.f32.mrb[0].mxu0
        %v1088 = vadd.f32 0.0, %v1087
        %v1089 = vpop.f32.mrb[0].mxu0
        %v1090 = vadd.f32 0.0, %v1089
        %v1091 = vpop.f32.mrb[0].mxu0
        %v1092 = vpop.f32.mrb[0].mxu0
        %1093 = vdwg.mxu0
        %1094 = vmatprep.subr.bf16.mxu0 0
        %1095 = vmatpush1.bf16.msra.mxu0 %v1051
        %1096 = vmatprep.subr.bf16.mxu0 0
        %1097 = vmatpush1.bf16.msra.mxu0 0
        %1098 = vmatprep.subr.bf16.mxu0 0
        %1099 = vmatpush1.bf16.msra.mxu0 0
        %1100 = vmatprep.subr.bf16.mxu0 0
        %1101 = vmatpush1.bf16.msra.mxu0 0
        %1102 = vmatprep.subr.bf16.mxu0 0
        %1103 = vmatpush1.bf16.msra.mxu0 0
        %1104 = vmatprep.subr.bf16.mxu0 0
        %1105 = vmatpush1.bf16.msra.mxu0 0
        %1106 = vmatprep.subr.bf16.mxu0 0
        %1107 = vmatpush1.bf16.msra.mxu0 0
        %1108 = vmatprep.subr.bf16.mxu0 0
        %1109 = vmatpush1.bf16.msra.mxu0 0
        %1110 = vmatprep.subr.bf16.mxu0 0
        %1111 = vmatpush1.bf16.msra.mxu0 0
        %1112 = vmatprep.subr.bf16.mxu0 0
        %1113 = vmatpush1.bf16.msra.mxu0 0
        %1114 = vmatprep.subr.bf16.mxu0 0
        %1115 = vmatpush1.bf16.msra.mxu0 0
        %1116 = vmatprep.subr.bf16.mxu0 0
        %1117 = vmatpush1.bf16.msra.mxu0 0
        %1118 = vmatprep.subr.bf16.mxu0 0
        %1119 = vmatpush1.bf16.msra.mxu0 0
        %1120 = vmatprep.subr.bf16.mxu0 0
        %1121 = vmatpush1.bf16.msra.mxu0 0
        %1122 = vmatprep.subr.bf16.mxu0 0
        %1123 = vmatpush1.bf16.msra.mxu0 0
        %1124 = vmatprep.subr.bf16.mxu0 0
        %1125 = vmatpush1.bf16.msra.mxu0 0
        %1126 = vmatprep.mubr.bf16.mxu0 0
        %1127 = vmatmul.mubr.bf16.gmra.mrb[0].mxu0 %v1042
        %v1128 = vpop.f32.mrb[0].mxu0
        %v1129 = vadd.f32 0.0, %v1128
        %v1130 = vpop.f32.mrb[0].mxu0
        %v1131 = vpop.f32.mrb[0].mxu0
        %v1132 = vpop.f32.mrb[0].mxu0
        %1133 = vdwg.mxu0
        %v1134 = vadd.f32 %v1027, %v1088
        %v1135 = vadd.f32 %v1028, %v1090
        %v1136 = vadd.f32 %v1029, %v1129
        %v1137 = vld [vmem:[%s2] sm:$0xff]
        %1139 = vset.pattern.permute.xlu0 0
        %1140 = vperm.xlu0 %1139, %v1137
        %v1141 = vpop.permute.xlu0 %1140
        %v1143 = vadd.f32 %v1134, %v1141
        %v1144 = vadd.f32 %v1135, %v1141
        %v1145 = vadd.f32 %v1136, %v1141
        %v1146 = vmul.f32 %v1143, 0.5
        %v1147 = vmul.f32 %v1144, 0.5
        %v1148 = vmul.f32 %v1145, 0.5
        %v1149 = vmul.f32 %v1143, %v1143
        %v1150 = vmul.f32 %v1144, %v1144
        %v1151 = vmul.f32 %v1145, %v1145
        %v1152 = vmul.f32 %v1149, %v1143
        %v1153 = vmul.f32 %v1150, %v1144
        %v1154 = vmul.f32 %v1151, %v1145
        %v1155 = vmul.f32 %v1152, 0.044715
        %v1156 = vmul.f32 %v1153, 0.044715
        %v1157 = vmul.f32 %v1154, 0.044715
        %v1158 = vadd.f32 %v1143, %v1155
        %v1159 = vadd.f32 %v1144, %v1156
        %v1160 = vadd.f32 %v1145, %v1157
        %v1161 = vmul.f32 %v1158, 0.7978846
        %v1162 = vmul.f32 %v1159, 0.7978846
        %v1163 = vmul.f32 %v1160, 0.7978846
        %v1164 = vtanh.pop %v1161
        %v1165 = vtanh.pop %v1162
        %v1166 = vtanh.pop %v1163
        %v1167 = vadd.f32 %v1164, 1.0
        %v1168 = vadd.f32 %v1165, 1.0
        %v1169 = vadd.f32 %v1166, 1.0
        %v1170 = vmul.f32 %v1146, %v1167
        %v1171 = vmul.f32 %v1147, %v1168
        %v1172 = vmul.f32 %v1148, %v1169
        %1173 = vst [vmem:[%s163] sm:$0xff] %v1170
        %1174 = vst [vmem:[%s163 + $0x8] sm:$0xff] %v1171
        %vm1175 = vcmask 261120
        %1176 = vst.msk [vmem:[%s163 + $0x10] sm:$0xff] %vm1175, %v1172
        %s1177 = sand.u32 %s93, 1
        %s1178 = scalar_lea.sflag [#allocation3], %s1177
        %s1179 = sand.u32 %s93, 1
        %s1180 = smul.addr %s1179, 24
        %s1181 = scalar_lea.vmem [#allocation2], %s1180
        // Predicated region
        $region33: #{tpu_custom_call.1} parent=31 // pred_check
          %p1182 = pneg %p103
        $region34: #{tpu_custom_call.1} parent=31 // pred_check_branch
          %1184 = sbr.rel (%p1182) target = $region36
        $region35: #{tpu_custom_call.1} parent=31 // pred_region
          %s1186 = ssub.s32 384, 384
          %1187 = vsyncadd %s1178, %s1186
          %s1188 = smul.addr %s17, 3
          %s1189 = smul.addr %s1188, 128
          %s1190 = scalar_lea.hbm %s3, %s1189
          %s1192 = sshll.u32 %s1181, 4
          %s1193 = int_to_ptr.vmem [resolvable:$true] %s1192
          %1195 = dma.vmem_to_hbm [thread:$0]  %s1193, 384, %s1190, %s1178
        $region36: #{tpu_custom_call.1} parent=31 // pred_fallthru
          _
      $region32: #{tpu_custom_call.1} parent=5 // pred_fallthru
        _
      %p1196 = scmp.le.s32.totalorder 2, %s12
      // Predicated region
      $region37: #{tpu_custom_call.1} parent=5 // pred_check
        %p1197 = pneg %p1196
      $region38: #{tpu_custom_call.1} parent=5 // pred_check_branch
        %1199 = sbr.rel (%p1197) target = $region40
      $region39: #{tpu_custom_call.1} parent=5 // pred_region
        %s1200 = ssub.s32 %s12, 2
        // Predicated region
        $region41: #{tpu_custom_call.1} parent=39 // pred_check
          %p1201 = pneg %p109
        $region42: #{tpu_custom_call.1} parent=39 // pred_check_branch
          %1203 = sbr.rel (%p1201) target = $region44
        $region43: #{tpu_custom_call.1} parent=39 // pred_region
          %s1204 = sand.u32 %s94, 1
          %s1205 = scalar_lea.sflag [#allocation3], %s1204
          %s1206 = sand.u32 %s94, 1
          %s1207 = smul.addr %s1206, 24
          %s1208 = scalar_lea.vmem [#allocation2], %s1207
          %1209 = dma.done %s1205, 384
        $region44: #{tpu_custom_call.1} parent=39 // pred_fallthru
          _
      $region40: #{tpu_custom_call.1} parent=5 // pred_fallthru
        _
    $region6: #{tpu_custom_call.1} parent=1 // loop_footer
      %s16 = sadd.s32 1, %s12
    $region7: #{tpu_custom_call.1} parent=1 // loop_footer_branch
      %11 = sbr.rel target = $region3
    $region8: #{tpu_custom_call.1} parent=1 // loop_exit
      _
    %1210 = vsyncpa [#allocation3], 1
    %s1211 = scalar_lea.sflag [#allocation3], 1
    %1212 = vsyncpa %s1211, 1

</llo_original>
